<compile_context>
chip_gen: v7x
topology: tpu7x:2x2x1
jax: 0.10.0
libtpu: 0.0.40
codegen_flags: <defaults>
</compile_context>

<pallas_src>
import functools
import math

import jax
import jax.numpy as jnp
from jax import lax
from jax.experimental import pallas as pl
from jax.experimental.pallas import tpu as pltpu


def _round_up(v: int, m: int) -> int:
    return (v + m - 1) // m * m


# --------------------------------------------------------------------------
# In-kernel helpers
# --------------------------------------------------------------------------
def _zero_and_copy(x_ref, xpad_ref, q: int, n: int):
    """xpad[:, q:q+n] = x ; zeros elsewhere (scratch is uninitialized)."""
    tb = x_ref.shape[0]
    wpad = xpad_ref.shape[-1]
    if q > 0:
        xpad_ref[:, 0:q] = jnp.zeros((tb, q), jnp.float32)
    right = wpad - (q + n)
    if right > 0:
        xpad_ref[:, q + n:wpad] = jnp.zeros((tb, right), jnp.float32)
    xpad_ref[:, q:q + n] = x_ref[...]


def _run_slabs(slab_body, slab: int, n_slabs: int):
    """Static unroll for short slab counts, fori_loop otherwise."""
    if n_slabs <= 8:
        for si in range(n_slabs):
            slab_body(si * slab)
    else:
        def body(i, carry):
            slab_body(pl.multiple_of(i * slab, slab))
            return carry
        lax.fori_loop(0, n_slabs, body, 0)


def _conv_mxu_kernel(x_ref, band_ref, out_ref, xpad_ref, *,
                     q, n, slab, n_slabs):
    """Shared filter, banded-Toeplitz MXU path.

    x_ref:    (TB, N)            f32
    band_ref: (P + slab, slab)   f32  -- Band[j, s] = y[s + P - j] (0 outside band)
    out_ref:  (TB, Lout_pad)     f32  -- out[:, c] = conv_full[:, base + c]
    xpad_ref: (TB, Lout_pad + P) f32  -- scratch; x at offset q = P - base
    """
    _zero_and_copy(x_ref, xpad_ref, q, n)
    band = band_ref[...]
    wband = band.shape[0]

    def slab_body(s0):
        win = xpad_ref[:, pl.ds(s0, wband)]          # 128-aligned window
        out_ref[:, pl.ds(s0, slab)] = jnp.dot(
            win, band, preferred_element_type=jnp.float32)

    _run_slabs(slab_body, slab, n_slabs)


def _conv_vpu_shared_kernel(x_ref, y_ref, out_ref, xpad_ref, *,
                            q, n, p, m_taps, slab, n_slabs):
    """Shared small filter: taps read as scalars from SMEM (no broadcasts)."""
    _zero_and_copy(x_ref, xpad_ref, q, n)

    def slab_body(s0):
        acc = y_ref[0] * xpad_ref[:, pl.ds(s0 + p, slab)]
        for m in range(1, m_taps):
            acc = acc + y_ref[m] * xpad_ref[:, pl.ds(s0 + p - m, slab)]
        out_ref[:, pl.ds(s0, slab)] = acc

    _run_slabs(slab_body, slab, n_slabs)


def _conv_vpu_batched_kernel(x_ref, y_ref, out_ref, xpad_ref, *,
                             q, n, p, m_taps, slab, n_slabs):
    """Per-row filters: VPU shift-MAC, tap columns hoisted above the slab loop."""
    _zero_and_copy(x_ref, xpad_ref, q, n)
    taps = [y_ref[:, m:m + 1] for m in range(m_taps)]

    def slab_body(s0):
        acc = taps[0] * xpad_ref[:, pl.ds(s0 + p, slab)]
        for m in range(1, m_taps):
            acc = acc + taps[m] * xpad_ref[:, pl.ds(s0 + p - m, slab)]
        out_ref[:, pl.ds(s0, slab)] = acc

    _run_slabs(slab_body, slab, n_slabs)


# --------------------------------------------------------------------------
# Host wrapper
# --------------------------------------------------------------------------
def fft_convolve(x, y, mode: str = "full"):
    if mode not in ("full", "valid", "same"):
        raise ValueError(f"Unrecognized mode value '{mode}'.")
    x = jnp.asarray(x, jnp.float32)
    y = jnp.asarray(y, jnp.float32)
    N = int(x.shape[-1])
    M = int(y.shape[-1])
    L = N + M - 1

    lead = jnp.broadcast_shapes(x.shape[:-1], y.shape[:-1])
    B = int(math.prod(lead))

    # torchaudio _apply_convolve_mode offsets.
    if mode == "valid":
        out_len = max(N, M) - min(N, M) + 1
    elif mode == "same":
        out_len = N
    else:
        out_len = L
    start = (L - out_len) // 2

    if B == 0:
        return jnp.zeros(lead + (out_len,), jnp.float32)

    shared = math.prod(y.shape[:-1]) == 1
    use_mxu = shared and M >= 16

    # ---- static geometry ---------------------------------------------------
    base = (start // 128) * 128            # 128-aligned offset of the computed window
    off = start - base                     # trim inside the computed window
    P = 0 if M == 1 else _round_up(M - 1, 128)
    Q = P - base                           # x offset inside xpad scratch (>= 0)
    slab = 256 if use_mxu else 128
    Lout_pad = _round_up(off + out_len, slab)   # lane-dense computed width
    Wpad = Lout_pad + P
    n_slabs = Lout_pad // slab

    # ---- operands ------------------------------------------------------------
    xb = jnp.broadcast_to(x, lead + (N,)).reshape(B, N)
    Bp = _round_up(B, 8)
    if Bp != B:
        xb = jnp.pad(xb, ((0, Bp - B), (0, 0)))

    # ---- chip-aware VMEM sizing ---------------------------------------------
    try:
        vmem_cap = int(pltpu.get_tpu_info().vmem_capacity_bytes)
    except Exception:
        vmem_cap = 64 * 1024 * 1024        # conservative (v7x-like) fallback
    big_vmem = vmem_cap >= 100 * 1024 * 1024
    budget = (40 if big_vmem else 12) * 1024 * 1024
    tb_cap = 256 if (use_mxu and big_vmem) else 128

    band_bytes = 0
    if use_mxu:
        Wband = P + slab
        band_bytes = 2 * Wband * slab * 4
    per_row = 4 * (2 * N + 2 * Lout_pad + Wpad + (2 * M if not shared else 0))
    TB = (max(0, budget - band_bytes) // per_row) // 8 * 8
    TB = max(8, min(TB, tb_cap))
    TB = min(TB, Bp)
    if not big_vmem:
        # v7x: make sure the "parallel" batch axis has >= 2 steps for 2 TCs.
        TB = min(TB, max(8, _round_up(-(-Bp // 2), 8)))
    TB = max(8, TB)

    need = TB * per_row + band_bytes + (2 << 20)
    vmem_limit = int(min(max(32 * 1024 * 1024, need), vmem_cap - (8 << 20)))

    grid = (pl.cdiv(Bp, TB),)
    x_spec = pl.BlockSpec((TB, N), lambda i: (i, 0))
    out_spec = pl.BlockSpec((TB, Lout_pad), lambda i: (i, 0))
    scratch = [pltpu.VMEM((TB, Wpad), jnp.float32)]
    cparams = pltpu.CompilerParams(
        dimension_semantics=("parallel",),
        vmem_limit_bytes=vmem_limit,
    )

    if use_mxu:
        # Band[j, s] = y[s + P - j] inside the band, 0 outside; shared across slabs.
        yflat = y.reshape(M)
        j = jnp.arange(Wband)[:, None]
        s = jnp.arange(slab)[None, :]
        idx = s + P - j
        band = jnp.where((idx >= 0) & (idx < M),
                         yflat[jnp.clip(idx, 0, M - 1)],
                         jnp.float32(0)).astype(jnp.float32)
        kernel = functools.partial(_conv_mxu_kernel,
                                   q=Q, n=N, slab=slab, n_slabs=n_slabs)
        in_specs = [x_spec, pl.BlockSpec((Wband, slab), lambda i: (0, 0))]
        operands = (xb, band)
    elif shared:
        kernel = functools.partial(_conv_vpu_shared_kernel,
                                   q=Q, n=N, p=P, m_taps=M,
                                   slab=slab, n_slabs=n_slabs)
        in_specs = [x_spec,
                    pl.BlockSpec(memory_space=pltpu.MemorySpace.SMEM)]
        operands = (xb, y.reshape(M))
    else:
        yb = jnp.broadcast_to(y, lead + (M,)).reshape(B, M)
        if Bp != B:
            yb = jnp.pad(yb, ((0, Bp - B), (0, 0)))
        kernel = functools.partial(_conv_vpu_batched_kernel,
                                   q=Q, n=N, p=P, m_taps=M,
                                   slab=slab, n_slabs=n_slabs)
        in_specs = [x_spec, pl.BlockSpec((TB, M), lambda i: (i, 0))]
        operands = (xb, yb)

    padded = pl.pallas_call(
        kernel,
        out_shape=jax.ShapeDtypeStruct((Bp, Lout_pad), jnp.float32),
        grid=grid,
        in_specs=in_specs,
        out_specs=out_spec,
        scratch_shapes=scratch,
        compiler_params=cparams,
    )(*operands)

    out = padded[:B, off:off + out_len]
    return out.reshape(lead + (out_len,))


class FFTConvolve:
    """JAX/Pallas port of torchaudio.transforms.FFTConvolve (no parameters)."""

    def __init__(self, mode: str = "full"):
        if mode not in ("full", "valid", "same"):
            raise ValueError(f"Unrecognized mode value '{mode}'.")
        self.mode = mode

    def __call__(self, x, y):
        return fft_convolve(x, y, mode=self.mode)


if __name__ == "__main__":
    key = jax.random.PRNGKey(0)
    k1, k2, k3, k4, k5 = jax.random.split(key, 5)

    # 1) per-row filters (batched VPU path), full mode
    x = jax.random.normal(k1, (2, 4, 16), dtype=jnp.float32)
    y = jax.random.normal(k2, (4, 8), dtype=jnp.float32)
    out = jax.block_until_ready(FFTConvolve("full")(x, y))
    lead = jnp.broadcast_shapes(x.shape[:-1], y.shape[:-1])
    xf = jnp.broadcast_to(x, lead + (16,)).reshape(-1, 16)
    yf = jnp.broadcast_to(y, lead + (8,)).reshape(-1, 8)
    ref = jax.vmap(lambda a, b: jnp.convolve(a, b, mode="full"))(xf, yf)
    ref = ref.reshape(lead + (23,))
    assert out.shape == ref.shape
    assert jnp.allclose(out, ref, atol=1e-4, rtol=1e-4)

    # 2) shared small filter (SMEM scalar-tap VPU path)
    y1 = jax.random.normal(k3, (8,), dtype=jnp.float32)
    out1 = jax.block_until_ready(fft_convolve(x, y1, mode="full"))
    ref1 = jax.vmap(jax.vmap(lambda a: jnp.convolve(a, y1, mode="full")))(x)
    assert jnp.allclose(out1, ref1, atol=1e-4, rtol=1e-4)

    # 3) shared moderate filter (banded-Toeplitz MXU path), full + valid
    x3 = jax.random.normal(k4, (2, 4, 64), dtype=jnp.float32)
    y3 = jax.random.normal(k5, (32,), dtype=jnp.float32)
    out3 = jax.block_until_ready(fft_convolve(x3, y3, mode="full"))
    ref3 = jax.vmap(jax.vmap(lambda a: jnp.convolve(a, y3, mode="full")))(x3)
    assert out3.shape == ref3.shape
    assert jnp.allclose(out3, ref3, atol=2e-3, rtol=2e-3)
    out3v = jax.block_until_ready(fft_convolve(x3, y3, mode="valid"))
    L3, ov = 64 + 32 - 1, 64 - 32 + 1
    sv = (L3 - ov) // 2
    assert out3v.shape == (2, 4, ov)
    assert jnp.allclose(out3v, ref3[..., sv:sv + ov], atol=2e-3, rtol=2e-3)

    # 4) longer input: exercises the fori_loop slab path of the MXU kernel
    x4 = jax.random.normal(k1, (4, 2100), dtype=jnp.float32)
    y4 = jax.random.normal(k2, (64,), dtype=jnp.float32)
    out4 = jax.block_until_ready(fft_convolve(x4, y4, mode="full"))
    ref4 = jax.vmap(lambda a: jnp.convolve(a, y4, mode="full"))(x4)
    assert out4.shape == ref4.shape
    assert jnp.allclose(out4, ref4, atol=5e-3, rtol=5e-3)

    # 5) trimmed-mode shapes (per-row path)
    assert FFTConvolve("same")(x, y).shape == (2, 4, 16)
    assert FFTConvolve("valid")(x, y).shape == (2, 4, 16 - 8 + 1)

    print("KERNEL_OK")
</pallas_src>

<mosaic_0001>
module attributes {stable_mosaic.version = 11 : i64} {
  func.func @_conv_vpu_batched_kernel(%arg0: i32, %arg1: memref<8x16xf32, #tpu.memory_space<vmem>>, %arg2: memref<8x8xf32, #tpu.memory_space<vmem>>, %arg3: memref<8x128xf32, #tpu.memory_space<vmem>>, %arg4: memref<8x256xf32, #tpu.memory_space<vmem>>) attributes {dimension_semantics = [#tpu.dimension_semantics<parallel>], iteration_bounds = array<i64: 1>, scalar_prefetch = 0 : i64, scratch_operands = 1 : i64, tpu.core_type = #tpu.core_type<tc>, window_params = [{transform_indices = @transform_0, window_bounds = array<i64: 8, 16>}, {transform_indices = @transform_1, window_bounds = array<i64: 8, 8>}, {transform_indices = @transform_2, window_bounds = array<i64: 8, 128>}]} {
    %cst = arith.constant 0.000000e+00 : f32
    %0 = vector.broadcast %cst : f32 to vector<8x128xf32>
    %c0 = arith.constant 0 : index
    %c0_0 = arith.constant 0 : index
    %1 = vector.load %arg4[%c0, %c0_0] : memref<8x256xf32, #tpu.memory_space<vmem>>, vector<8x128xf32>
    tpu.vector_store %arg4[%c0, %c0_0], %0 {strides = array<i32>} : memref<8x256xf32, #tpu.memory_space<vmem>>, vector<8x128xf32>,
    %cst_1 = arith.constant 0.000000e+00 : f32
    %2 = vector.broadcast %cst_1 : f32 to vector<8x112xf32>
    %c0_2 = arith.constant 0 : index
    %c144 = arith.constant 144 : index
    %3 = vector.load %arg4[%c0_2, %c144] : memref<8x256xf32, #tpu.memory_space<vmem>>, vector<8x112xf32>
    tpu.vector_store %arg4[%c0_2, %c144], %2 {strides = array<i32>} : memref<8x256xf32, #tpu.memory_space<vmem>>, vector<8x112xf32>,
    %c0_3 = arith.constant 0 : index
    %c0_4 = arith.constant 0 : index
    %4 = vector.load %arg1[%c0_3, %c0_4] : memref<8x16xf32, #tpu.memory_space<vmem>>, vector<8x16xf32>
    %c0_5 = arith.constant 0 : index
    %c128 = arith.constant 128 : index
    %5 = vector.load %arg4[%c0_5, %c128] : memref<8x256xf32, #tpu.memory_space<vmem>>, vector<8x16xf32>
    tpu.vector_store %arg4[%c0_5, %c128], %4 {strides = array<i32>} : memref<8x256xf32, #tpu.memory_space<vmem>>, vector<8x16xf32>,
    %c0_6 = arith.constant 0 : index
    %c0_7 = arith.constant 0 : index
    %6 = vector.load %arg2[%c0_6, %c0_7] : memref<8x8xf32, #tpu.memory_space<vmem>>, vector<8x1xf32>
    %c0_8 = arith.constant 0 : index
    %c1 = arith.constant 1 : index
    %7 = vector.load %arg2[%c0_8, %c1] : memref<8x8xf32, #tpu.memory_space<vmem>>, vector<8x1xf32>
    %c0_9 = arith.constant 0 : index
    %c2 = arith.constant 2 : index
    %8 = vector.load %arg2[%c0_9, %c2] : memref<8x8xf32, #tpu.memory_space<vmem>>, vector<8x1xf32>
    %c0_10 = arith.constant 0 : index
    %c3 = arith.constant 3 : index
    %9 = vector.load %arg2[%c0_10, %c3] : memref<8x8xf32, #tpu.memory_space<vmem>>, vector<8x1xf32>
    %c0_11 = arith.constant 0 : index
    %c4 = arith.constant 4 : index
    %10 = vector.load %arg2[%c0_11, %c4] : memref<8x8xf32, #tpu.memory_space<vmem>>, vector<8x1xf32>
    %c0_12 = arith.constant 0 : index
    %c5 = arith.constant 5 : index
    %11 = vector.load %arg2[%c0_12, %c5] : memref<8x8xf32, #tpu.memory_space<vmem>>, vector<8x1xf32>
    %c0_13 = arith.constant 0 : index
    %c6 = arith.constant 6 : index
    %12 = vector.load %arg2[%c0_13, %c6] : memref<8x8xf32, #tpu.memory_space<vmem>>, vector<8x1xf32>
    %c0_14 = arith.constant 0 : index
    %c7 = arith.constant 7 : index
    %13 = vector.load %arg2[%c0_14, %c7] : memref<8x8xf32, #tpu.memory_space<vmem>>, vector<8x1xf32>
    %c0_15 = arith.constant 0 : index
    %c128_16 = arith.constant 128 : index
    %14 = vector.load %arg4[%c0_15, %c128_16] : memref<8x256xf32, #tpu.memory_space<vmem>>, vector<8x128xf32>
    %15 = vector.broadcast %6 : vector<8x1xf32> to vector<8x128xf32>
    %16 = arith.mulf %15, %14 : vector<8x128xf32>
    %c0_17 = arith.constant 0 : index
    %c127 = arith.constant 127 : index
    %17 = vector.load %arg4[%c0_17, %c127] : memref<8x256xf32, #tpu.memory_space<vmem>>, vector<8x128xf32>
    %18 = vector.broadcast %7 : vector<8x1xf32> to vector<8x128xf32>
    %19 = arith.mulf %18, %17 : vector<8x128xf32>
    %20 = arith.addf %16, %19 : vector<8x128xf32>
    %c0_18 = arith.constant 0 : index
    %c126 = arith.constant 126 : index
    %21 = vector.load %arg4[%c0_18, %c126] : memref<8x256xf32, #tpu.memory_space<vmem>>, vector<8x128xf32>
    %22 = vector.broadcast %8 : vector<8x1xf32> to vector<8x128xf32>
    %23 = arith.mulf %22, %21 : vector<8x128xf32>
    %24 = arith.addf %20, %23 : vector<8x128xf32>
    %c0_19 = arith.constant 0 : index
    %c125 = arith.constant 125 : index
    %25 = vector.load %arg4[%c0_19, %c125] : memref<8x256xf32, #tpu.memory_space<vmem>>, vector<8x128xf32>
    %26 = vector.broadcast %9 : vector<8x1xf32> to vector<8x128xf32>
    %27 = arith.mulf %26, %25 : vector<8x128xf32>
    %28 = arith.addf %24, %27 : vector<8x128xf32>
    %c0_20 = arith.constant 0 : index
    %c124 = arith.constant 124 : index
    %29 = vector.load %arg4[%c0_20, %c124] : memref<8x256xf32, #tpu.memory_space<vmem>>, vector<8x128xf32>
    %30 = vector.broadcast %10 : vector<8x1xf32> to vector<8x128xf32>
    %31 = arith.mulf %30, %29 : vector<8x128xf32>
    %32 = arith.addf %28, %31 : vector<8x128xf32>
    %c0_21 = arith.constant 0 : index
    %c123 = arith.constant 123 : index
    %33 = vector.load %arg4[%c0_21, %c123] : memref<8x256xf32, #tpu.memory_space<vmem>>, vector<8x128xf32>
    %34 = vector.broadcast %11 : vector<8x1xf32> to vector<8x128xf32>
    %35 = arith.mulf %34, %33 : vector<8x128xf32>
    %36 = arith.addf %32, %35 : vector<8x128xf32>
    %c0_22 = arith.constant 0 : index
    %c122 = arith.constant 122 : index
    %37 = vector.load %arg4[%c0_22, %c122] : memref<8x256xf32, #tpu.memory_space<vmem>>, vector<8x128xf32>
    %38 = vector.broadcast %12 : vector<8x1xf32> to vector<8x128xf32>
    %39 = arith.mulf %38, %37 : vector<8x128xf32>
    %40 = arith.addf %36, %39 : vector<8x128xf32>
    %c0_23 = arith.constant 0 : index
    %c121 = arith.constant 121 : index
    %41 = vector.load %arg4[%c0_23, %c121] : memref<8x256xf32, #tpu.memory_space<vmem>>, vector<8x128xf32>
    %42 = vector.broadcast %13 : vector<8x1xf32> to vector<8x128xf32>
    %43 = arith.mulf %42, %41 : vector<8x128xf32>
    %44 = arith.addf %40, %43 : vector<8x128xf32>
    %c0_24 = arith.constant 0 : index
    %c0_25 = arith.constant 0 : index
    %45 = vector.load %arg3[%c0_24, %c0_25] : memref<8x128xf32, #tpu.memory_space<vmem>>, vector<8x128xf32>
    tpu.vector_store %arg3[%c0_24, %c0_25], %44 {strides = array<i32>} : memref<8x128xf32, #tpu.memory_space<vmem>>, vector<8x128xf32>,
    return
  }
  func.func @transform_0(%arg0: i32) -> (i32, i32) {
    %c0_i32 = arith.constant 0 : i32
    %c0_i32_0 = arith.constant 0 : i32
    return %arg0, %c0_i32 : i32, i32
  }
  func.func @transform_1(%arg0: i32) -> (i32, i32) {
    %c0_i32 = arith.constant 0 : i32
    %c0_i32_0 = arith.constant 0 : i32
    return %arg0, %c0_i32 : i32, i32
  }
  func.func @transform_2(%arg0: i32) -> (i32, i32) {
    %c0_i32 = arith.constant 0 : i32
    %c0_i32_0 = arith.constant 0 : i32
    return %arg0, %c0_i32 : i32, i32
  }
}

</mosaic_0001>

<llo_original>
// kernel: tpu_custom_call.1
$region0: #{tpu_custom_call.1}
  #allocation0 [shape = 'u32[]', space=smem, size = 0x4, offset = 0x4, fixed_abs, tag = 'smem constant byte address 0x4 - core index']
  #allocation1 [shape = 'u32[144,128]{1,0:T(1,128)}', space=vmem, size = 0x12000, scoped, tag = 'internal scratch']
  #allocation2 [shape = 'f32[8,256]{1,0:T(8,128)}', space=vmem, size = 0x2000, scoped, tag = 'scratch operand']
  %s0 = inlined_call_operand.hbm [shape: f32[8,16], index: 0, kind: input, shape index: {}]
  %s1 = inlined_call_operand.hbm [shape: f32[8,8], index: 1, kind: input, shape index: {}]
  %s2 = inlined_call_operand.hbm [shape: f32[8,128], index: 2, kind: output, shape index: {}]
  %s3 = sld [smem:[#allocation0]]
  $region26: #{tpu_custom_call.1} parent=0
    _
  %s5 = ssub.s32 1, %s3
  %s6 = scalar_select 0, %s5, %s3
  $region1: #{tpu_custom_call.1} parent=0
    #allocation3 [shape = 'u8[4096]{0}', space=vmem, size = 0x1000, scoped, tag = 'input window, operand 0, single buffered']
    #allocation4 [shape = 's32[1]{0}', space=sflag, size = 0x4, scoped, tag = 'scoped memory for tpu_custom_call.1']
    #allocation5 [shape = 's32[1]{0}', space=sflag, size = 0x4, scoped, tag = 'scoped memory for tpu_custom_call.1']
    #allocation6 [shape = 'u8[4096]{0}', space=vmem, size = 0x1000, scoped, tag = 'input window, operand 1, single buffered']
    #allocation7 [shape = 's32[1]{0}', space=sflag, size = 0x4, scoped, tag = 'scoped memory for tpu_custom_call.1']
    #allocation8 [shape = 'u8[4096]{0}', space=vmem, size = 0x1000, scoped, tag = 'output window, operand 0, single buffered']
    %7 = vsyncpa [#allocation4], 0
    %8 = vsyncpa [#allocation7], 0
    %9 = vsyncpa [#allocation5], 0
    // Predicated region
    $region2: #{tpu_custom_call.1} parent=1 // pred_check
      _
    $region3: #{tpu_custom_call.1} parent=1 // pred_check_branch
      %11 = sbr.rel (0) target = $region5
    $region4: #{tpu_custom_call.1} parent=1 // pred_region
      %s13 = ssub.s32 128, 128
      %14 = vsyncadd [#allocation4], %s13
      %s16 = sshll.u32 [#allocation3], 4
      %s17 = int_to_ptr.vmem [resolvable:$true] %s16
      %19 = dma.hbm_to_vmem [thread:$0]  %s0, 128, %s17, [#allocation4]
    $region5: #{tpu_custom_call.1} parent=1 // pred_fallthru
      _
    // Predicated region
    $region6: #{tpu_custom_call.1} parent=1 // pred_check
      _
    $region7: #{tpu_custom_call.1} parent=1 // pred_check_branch
      %21 = sbr.rel (0) target = $region9
    $region8: #{tpu_custom_call.1} parent=1 // pred_region
      %s23 = ssub.s32 128, 128
      %24 = vsyncadd [#allocation7], %s23
      %s26 = sshll.u32 [#allocation6], 4
      %s27 = int_to_ptr.vmem [resolvable:$true] %s26
      %29 = dma.hbm_to_vmem [thread:$0]  %s1, 128, %s27, [#allocation7]
    $region9: #{tpu_custom_call.1} parent=1 // pred_fallthru
      _
    // Predicated region
    $region10: #{tpu_custom_call.1} parent=1 // pred_check
      _
    $region11: #{tpu_custom_call.1} parent=1 // pred_check_branch
      %31 = sbr.rel (0) target = $region13
    $region12: #{tpu_custom_call.1} parent=1 // pred_region
      %32 = dma.done [#allocation4], 128
    $region13: #{tpu_custom_call.1} parent=1 // pred_fallthru
      _
    // Predicated region
    $region14: #{tpu_custom_call.1} parent=1 // pred_check
      _
    $region15: #{tpu_custom_call.1} parent=1 // pred_check_branch
      %34 = sbr.rel (0) target = $region17
    $region16: #{tpu_custom_call.1} parent=1 // pred_region
      %35 = dma.done [#allocation7], 128
    $region17: #{tpu_custom_call.1} parent=1 // pred_fallthru
      _
    %36 = vst [vmem:[#allocation2] sm:$0xff] 0.0
    %vm37 = vcmask 1047680
    %38 = vst.msk [vmem:[#allocation2 + $0x8] sm:$0xff] %vm37, 0.0
    %v39 = vld [vmem:[#allocation3] sm:$0xff]
    %vm40 = vcmask 130048
    %41 = vst.msk [vmem:[#allocation2 + $0x8] sm:$0xff] %vm40, %v39
    %v42 = vld [vmem:[#allocation6] sm:$0xff]
    %v43 = vld [vmem:[#allocation2 + $0x8] sm:$0xff]
    %45 = vset.pattern.permute.xlu0 0
    %46 = vperm.xlu0 %45, %v42
    %v47 = vpop.permute.xlu0 %46
    %v49 = vmul.f32 %v47, %v43
    %v50 = vld [vmem:[#allocation2] sm:$0xff]
    %51 = vset.pattern.permute.xlu0 1
    %52 = vperm.xlu0 %51, %v42
    %v53 = vpop.permute.xlu0 %52
    %v55 = vmul.f32 %v53, %v50
    %v56 = vmul.f32 %v53, %v43
    %59 = vrot.lane.b32.xlu0 %v55, 1
    %v60 = vpop.permute.xlu0 %59
    %61 = vrot.lane.b32.xlu0 %v56, 1
    %v62 = vpop.permute.xlu0 %61
    %vm63 = vcmask 7168
    %v64 = vsel %vm63, %v60, %v62
    %v66 = vadd.f32 %v49, %v64
    %67 = vset.pattern.permute.xlu0 2
    %68 = vperm.xlu0 %67, %v42
    %v69 = vpop.permute.xlu0 %68
    %v71 = vmul.f32 %v69, %v50
    %v72 = vmul.f32 %v69, %v43
    %75 = vrot.lane.b32.xlu0 %v71, 2
    %v76 = vpop.permute.xlu0 %75
    %77 = vrot.lane.b32.xlu0 %v72, 2
    %v78 = vpop.permute.xlu0 %77
    %vm79 = vcmask 15360
    %v80 = vsel %vm79, %v76, %v78
    %v82 = vadd.f32 %v66, %v80
    %83 = vset.pattern.permute.xlu0 3
    %84 = vperm.xlu0 %83, %v42
    %v85 = vpop.permute.xlu0 %84
    %v87 = vmul.f32 %v85, %v50
    %v88 = vmul.f32 %v85, %v43
    %91 = vrot.lane.b32.xlu0 %v87, 3
    %v92 = vpop.permute.xlu0 %91
    %93 = vrot.lane.b32.xlu0 %v88, 3
    %v94 = vpop.permute.xlu0 %93
    %vm95 = vcmask 23552
    %v96 = vsel %vm95, %v92, %v94
    %v98 = vadd.f32 %v82, %v96
    %99 = vset.pattern.permute.xlu0 4
    %100 = vperm.xlu0 %99, %v42
    %v101 = vpop.permute.xlu0 %100
    %v103 = vmul.f32 %v101, %v50
    %v104 = vmul.f32 %v101, %v43
    %107 = vrot.lane.b32.xlu0 %v103, 4
    %v108 = vpop.permute.xlu0 %107
    %109 = vrot.lane.b32.xlu0 %v104, 4
    %v110 = vpop.permute.xlu0 %109
    %vm111 = vcmask 31744
    %v112 = vsel %vm111, %v108, %v110
    %v114 = vadd.f32 %v98, %v112
    %115 = vset.pattern.permute.xlu0 5
    %116 = vperm.xlu0 %115, %v42
    %v117 = vpop.permute.xlu0 %116
    %v119 = vmul.f32 %v117, %v50
    %v120 = vmul.f32 %v117, %v43
    %123 = vrot.lane.b32.xlu0 %v119, 5
    %v124 = vpop.permute.xlu0 %123
    %125 = vrot.lane.b32.xlu0 %v120, 5
    %v126 = vpop.permute.xlu0 %125
    %vm127 = vcmask 39936
    %v128 = vsel %vm127, %v124, %v126
    %v130 = vadd.f32 %v114, %v128
    %131 = vset.pattern.permute.xlu0 6
    %132 = vperm.xlu0 %131, %v42
    %v133 = vpop.permute.xlu0 %132
    %v135 = vmul.f32 %v133, %v50
    %v136 = vmul.f32 %v133, %v43
    %139 = vrot.lane.b32.xlu0 %v135, 6
    %v140 = vpop.permute.xlu0 %139
    %141 = vrot.lane.b32.xlu0 %v136, 6
    %v142 = vpop.permute.xlu0 %141
    %vm143 = vcmask 48128
    %v144 = vsel %vm143, %v140, %v142
    %v146 = vadd.f32 %v130, %v144
    %147 = vset.pattern.permute.xlu0 7
    %148 = vperm.xlu0 %147, %v42
    %v149 = vpop.permute.xlu0 %148
    %v151 = vmul.f32 %v149, %v50
    %v152 = vmul.f32 %v149, %v43
    %155 = vrot.lane.b32.xlu0 %v151, 7
    %v156 = vpop.permute.xlu0 %155
    %157 = vrot.lane.b32.xlu0 %v152, 7
    %v158 = vpop.permute.xlu0 %157
    %vm159 = vcmask 56320
    %v160 = vsel %vm159, %v156, %v158
    %v162 = vadd.f32 %v146, %v160
    %163 = vst [vmem:[#allocation8] sm:$0xff] %v162
    // Predicated region
    $region18: #{tpu_custom_call.1} parent=1 // pred_check
      _
    $region19: #{tpu_custom_call.1} parent=1 // pred_check_branch
      %165 = sbr.rel (0) target = $region21
    $region20: #{tpu_custom_call.1} parent=1 // pred_region
      %s167 = ssub.s32 128, 128
      %168 = vsyncadd [#allocation5], %s167
      %s170 = sshll.u32 [#allocation8], 4
      %s171 = int_to_ptr.vmem [resolvable:$true] %s170
      %173 = dma.vmem_to_hbm [thread:$0]  %s171, 128, %s2, [#allocation5]
    $region21: #{tpu_custom_call.1} parent=1 // pred_fallthru
      _
    // Predicated region
    $region22: #{tpu_custom_call.1} parent=1 // pred_check
      _
    $region23: #{tpu_custom_call.1} parent=1 // pred_check_branch
      %175 = sbr.rel (0) target = $region25
    $region24: #{tpu_custom_call.1} parent=1 // pred_region
      %176 = dma.done [#allocation5], 128
    $region25: #{tpu_custom_call.1} parent=1 // pred_fallthru
      _
    %177 = vsyncpa [#allocation4], 1
    %178 = vsyncpa [#allocation7], 1
    %179 = vsyncpa [#allocation5], 1

</llo_original>
